<compile_context>
chip_gen: v6e
topology: v6e:2x2x1
jax: 0.10.0
libtpu: 0.0.40
codegen_flags: <defaults>
</compile_context>

<pallas_src>
import jax
import jax.numpy as jnp
from jax.experimental import pallas as pl
from jax.experimental.pallas import tpu as pltpu


def _cdiv(a, b):
    return -(-a // b)


def _round_up(a, b):
    return _cdiv(a, b) * b


def _tpu_params():
    """(per-core VMEM bytes, #TensorCores sharing the grid), with safe fallbacks."""
    vmem_cap = 64 << 20          # conservative default (v7x per-core VMEM)
    n_tc = 0
    try:
        info = pltpu.get_tpu_info()
        vmem_cap = int(getattr(info, "vmem_capacity_bytes", vmem_cap) or vmem_cap)
        for attr in ("num_cores", "core_count", "tensorcore_count"):
            v = getattr(info, attr, None)
            if v:
                n_tc = int(v)
                break
    except Exception:
        pass
    if n_tc <= 0:
        # Heuristic: 64 MiB per-core VMEM => v7x-class part (2 TC/chip); 128 MiB => v5e/v6e.
        # Guessing "2" on a single-core part only affects grid balancing (harmless).
        n_tc = 2 if vmem_cap <= (64 << 20) else 1
    return vmem_cap, n_tc


def _per_plane_vmem(h, w, ho, wo, itemsize, k):
    """Conservative live-VMEM estimate per (n, c) plane in a block.

    Counts double-buffered I/O plus in-kernel temporaries (relayout copy, trimmed slice,
    row_max) at their lane/sublane-padded VMEM footprint, since strided slices / reshapes
    are not views on TPU.
    """
    plane_hbm = h * w * itemsize
    plane_pad = _round_up(max(h, 1), 8) * _round_up(max(w, 1), 128) * itemsize
    out_pad = _round_up(max(ho, 1), 8) * _round_up(max(wo, 1), 128) * itemsize
    del k
    return 2.0 * plane_hbm + 3.5 * plane_pad + 3.0 * out_pad


def _pick_planes_per_block(nc, per_plane_live, plane_hbm, vmem_budget, target_bytes, n_tc):
    p = min(nc,
            max(1, int(vmem_budget // max(per_plane_live, 1.0))),
            max(1, int(target_bytes // max(plane_hbm, 1))))
    if p < nc:
        # Second-minor dim of a 2-D block must be a multiple of 8 (or the full dim).
        p = min(nc, max(8, (p // 8) * 8))
    if p >= nc:
        p = nc
        if n_tc >= 2 and nc >= 16:
            # Dual-TensorCore part: split so both cores get work (halves stay 8-aligned).
            half = _round_up(_cdiv(nc, 2), 8)
            if half < nc:
                p = half
    elif n_tc >= 2:
        nb = _cdiv(nc, p)
        if nb > 1 and nb % 2 == 1:
            # Prefer an even number of grid steps so the two TensorCores stay balanced.
            for cand in range(p - 8, max(8, p // 2) - 1, -8):
                if _cdiv(nc, cand) % 2 == 0:
                    p = cand
                    break
    return int(p)


def _make_strided_kernel(*, k, p, h, w, hk, wk, ho, wo, flat_in, flat_out):
    def kernel(x_ref, o_ref):
        x = x_ref[...]
        if flat_in:
            x = x.reshape(p, h, w)            # lane-dense load; relayout at VMEM speed
        if hk != h or wk != w:                # ceil_mode=False trim, static in-kernel slice
            x = x[:, :hk, :wk]
        # Two-stage window max: collapse the k row offsets first (sublane-only),
        # then the k column offsets on the k-times-smaller intermediate.
        row_max = x[:, 0::k, :]
        for di in range(1, k):
            row_max = jnp.maximum(row_max, x[:, di::k, :])
        acc = row_max[:, :, 0::k]
        for dj in range(1, k):
            acc = jnp.maximum(acc, row_max[:, :, dj::k])
        acc = acc.astype(o_ref.dtype)
        if flat_out:
            acc = acc.reshape(p, ho * wo)     # lane-dense, unmasked store
        o_ref[...] = acc
    return kernel


def _run_strided(planes, *, k, nc, h, w, hk, wk, ho, wo, p, vmem_limit, flat_in, flat_out):
    nb = _cdiv(nc, p)                         # ragged last block handled by Pallas masking
    if flat_in:
        src = planes.reshape(nc, h * w)       # free (row-major collapse)
        in_spec = pl.BlockSpec((p, h * w), lambda b: (b, 0))
    else:
        src = planes
        in_spec = pl.BlockSpec((p, h, w), lambda b: (b, 0, 0))
    if flat_out:
        out_shape = jax.ShapeDtypeStruct((nc, ho * wo), planes.dtype)
        out_spec = pl.BlockSpec((p, ho * wo), lambda b: (b, 0))
    else:
        out_shape = jax.ShapeDtypeStruct((nc, ho, wo), planes.dtype)
        out_spec = pl.BlockSpec((p, ho, wo), lambda b: (b, 0, 0))
    kernel = _make_strided_kernel(k=k, p=p, h=h, w=w, hk=hk, wk=wk, ho=ho, wo=wo,
                                  flat_in=flat_in, flat_out=flat_out)
    return pl.pallas_call(
        kernel,
        out_shape=out_shape,
        grid_spec=pl.GridSpec(grid=(nb,), in_specs=[in_spec], out_specs=out_spec),
        compiler_params=pltpu.CompilerParams(
            dimension_semantics=("parallel",),
            vmem_limit_bytes=vmem_limit,
        ),
    )(src)


def _run_stacked(x, *, k, nc, hk, wk, ho, wo, p, vmem_limit):
    """Bulletproof fallback: XLA pre-strides the k*k window offsets, kernel is elementwise max."""
    xt = x[:, :, :hk, :wk]
    k2 = k * k
    wins = jnp.stack([xt[:, :, di::k, dj::k] for di in range(k) for dj in range(k)], axis=0)
    wins = wins.reshape(k2, nc, ho * wo)
    nb = _cdiv(nc, p)

    def kernel(x_ref, o_ref):
        m = x_ref[0]
        for i in range(1, k2):
            m = jnp.maximum(m, x_ref[i])
        o_ref[...] = m.astype(o_ref.dtype)

    return pl.pallas_call(
        kernel,
        out_shape=jax.ShapeDtypeStruct((nc, ho * wo), x.dtype),
        grid_spec=pl.GridSpec(
            grid=(nb,),
            in_specs=[pl.BlockSpec((k2, p, ho * wo), lambda b: (0, b, 0))],
            out_specs=pl.BlockSpec((p, ho * wo), lambda b: (b, 0)),
        ),
        compiler_params=pltpu.CompilerParams(
            dimension_semantics=("parallel",),
            vmem_limit_bytes=vmem_limit,
        ),
    )(wins)


_VARIANT_CACHE = {}


def max_pool_2d(x, k=2, *, plane_block=None):
    """MaxPool2d(kernel_size=k, stride=k) on NCHW input (PyTorch ceil_mode=False)."""
    n, c, h, w = x.shape
    ho, wo = h // k, w // k
    nc = n * c
    if nc == 0 or ho == 0 or wo == 0:
        return jnp.zeros((n, c, ho, wo), dtype=x.dtype)
    hk, wk = ho * k, wo * k

    itemsize = jnp.dtype(x.dtype).itemsize
    vmem_cap, n_tc = _tpu_params()
    vmem_cap_limit = int(min(0.85 * vmem_cap, 112 << 20))          # 54 MiB-ish on v7x, 112 MiB v5e/v6e
    target_block_bytes = (12 << 20) if n_tc >= 2 else (16 << 20)

    plane_hbm = h * w * itemsize
    per_plane_live = _per_plane_vmem(h, w, ho, wo, itemsize, k)
    if plane_block is not None:
        p = min(max(1, int(plane_block)), nc)
        if p < nc and p % 8 != 0:
            p = min(nc, max(8, (p // 8) * 8))
    else:
        p = _pick_planes_per_block(nc, per_plane_live, plane_hbm,
                                   vmem_cap_limit - (4 << 20), target_block_bytes, n_tc)
    vmem_limit = int(min(vmem_cap_limit, max(32 << 20, int(per_plane_live * p) + (8 << 20))))

    planes = x.reshape(nc, h, w)                                   # free (row-major collapse)
    common = dict(k=k, nc=nc, hk=hk, wk=wk, ho=ho, wo=wo, p=p, vmem_limit=vmem_limit)
    attempts = (
        # Ordered best-performance first; later entries only exist as fallbacks for Mosaic
        # versions that reject the in-kernel relayout and/or strided value slices.
        lambda: _run_strided(planes, h=h, w=w, flat_in=True, flat_out=True, **common),
        lambda: _run_strided(planes, h=h, w=w, flat_in=False, flat_out=True, **common),
        lambda: _run_strided(planes, h=h, w=w, flat_in=False, flat_out=False, **common),
        lambda: _run_stacked(x, **common),
    )

    key = (n, c, h, w, str(x.dtype), int(k), int(p))
    idx = _VARIANT_CACHE.get(key)
    if idx is not None:
        out = attempts[idx]()
    else:
        out, err = None, None
        for i, run in enumerate(attempts):
            try:
                out = jax.block_until_ready(run())
                _VARIANT_CACHE[key] = i
                break
            except Exception as e:            # lowering / compile rejection -> simpler variant
                err, out = e, None
        if out is None:
            raise err
    return out.reshape(n, c, ho, wo)


def _ref_max_pool(x, k=2):
    n, c, h, w = x.shape
    ho, wo = h // k, w // k
    xt = x[:, :, : ho * k, : wo * k]
    return xt.reshape(n, c, ho, k, wo, k).max(axis=(3, 5))


if __name__ == "__main__":
    key = jax.random.PRNGKey(0)
    k0, k1, k2 = jax.random.split(key, 3)

    # Primary check: small NCHW shapes consistent with the MP module.
    x = jax.random.normal(k0, (2, 4, 16, 16), dtype=jnp.float32)
    y = jax.block_until_ready(max_pool_2d(x, k=2))
    assert y.shape == (2, 4, 8, 8), y.shape
    assert jnp.allclose(y, _ref_max_pool(x, k=2)), "mismatch vs reference max pool"

    # Edge case: odd spatial dims (ceil_mode=False trimming, handled in-kernel).
    x2 = jax.random.normal(k1, (1, 3, 9, 7), dtype=jnp.float32)
    y2 = jax.block_until_ready(max_pool_2d(x2, k=2))
    assert y2.shape == (1, 3, 4, 3), y2.shape
    assert jnp.allclose(y2, _ref_max_pool(x2, k=2)), "mismatch (odd-size path)"

    # Edge case: ragged last plane block (nc % p != 0, no padding copy) -- locks in that
    # garbage read in the tail block only reaches output rows Pallas masks on writeback.
    x3 = jax.random.normal(k2, (1, 11, 16, 16), dtype=jnp.float32)
    y3 = jax.block_until_ready(max_pool_2d(x3, k=2, plane_block=8))
    assert y3.shape == (1, 11, 8, 8), y3.shape
    assert jnp.allclose(y3, _ref_max_pool(x3, k=2)), "mismatch (ragged tail block path)"

    print("KERNEL_OK")
</pallas_src>

<mosaic_0001>
module attributes {stable_mosaic.version = 11 : i64} {
  func.func @kernel(%arg0: i32, %arg1: memref<4x8x64xf32, #tpu.memory_space<vmem>>, %arg2: memref<8x64xf32, #tpu.memory_space<vmem>>) attributes {dimension_semantics = [#tpu.dimension_semantics<parallel>], iteration_bounds = array<i64: 1>, scalar_prefetch = 0 : i64, scratch_operands = 0 : i64, tpu.core_type = #tpu.core_type<tc>, window_params = [{transform_indices = @transform_0, window_bounds = array<i64: 4, 8, 64>}, {transform_indices = @transform_1, window_bounds = array<i64: 8, 64>}]} {
    %c0 = arith.constant 0 : index
    %c0_0 = arith.constant 0 : index
    %c0_1 = arith.constant 0 : index
    %0 = vector.load %arg1[%c0, %c0_0, %c0_1] : memref<4x8x64xf32, #tpu.memory_space<vmem>>, vector<1x8x64xf32>
    %1 = vector.shape_cast %0 : vector<1x8x64xf32> to vector<8x64xf32>
    %c1 = arith.constant 1 : index
    %c0_2 = arith.constant 0 : index
    %c0_3 = arith.constant 0 : index
    %2 = vector.load %arg1[%c1, %c0_2, %c0_3] : memref<4x8x64xf32, #tpu.memory_space<vmem>>, vector<1x8x64xf32>
    %3 = vector.shape_cast %2 : vector<1x8x64xf32> to vector<8x64xf32>
    %4 = arith.maximumf %1, %3 : vector<8x64xf32>
    %c2 = arith.constant 2 : index
    %c0_4 = arith.constant 0 : index
    %c0_5 = arith.constant 0 : index
    %5 = vector.load %arg1[%c2, %c0_4, %c0_5] : memref<4x8x64xf32, #tpu.memory_space<vmem>>, vector<1x8x64xf32>
    %6 = vector.shape_cast %5 : vector<1x8x64xf32> to vector<8x64xf32>
    %7 = arith.maximumf %4, %6 : vector<8x64xf32>
    %c3 = arith.constant 3 : index
    %c0_6 = arith.constant 0 : index
    %c0_7 = arith.constant 0 : index
    %8 = vector.load %arg1[%c3, %c0_6, %c0_7] : memref<4x8x64xf32, #tpu.memory_space<vmem>>, vector<1x8x64xf32>
    %9 = vector.shape_cast %8 : vector<1x8x64xf32> to vector<8x64xf32>
    %10 = arith.maximumf %7, %9 : vector<8x64xf32>
    %c0_8 = arith.constant 0 : index
    %c0_9 = arith.constant 0 : index
    %11 = vector.load %arg2[%c0_8, %c0_9] : memref<8x64xf32, #tpu.memory_space<vmem>>, vector<8x64xf32>
    tpu.vector_store %arg2[%c0_8, %c0_9], %10 {strides = array<i32>} : memref<8x64xf32, #tpu.memory_space<vmem>>, vector<8x64xf32>,
    return
  }
  func.func @transform_0(%arg0: i32) -> (i32, i32, i32) {
    %c0_i32 = arith.constant 0 : i32
    %c0_i32_0 = arith.constant 0 : i32
    %c0_i32_1 = arith.constant 0 : i32
    return %c0_i32, %arg0, %c0_i32_0 : i32, i32, i32
  }
  func.func @transform_1(%arg0: i32) -> (i32, i32) {
    %c0_i32 = arith.constant 0 : i32
    %c0_i32_0 = arith.constant 0 : i32
    return %arg0, %c0_i32 : i32, i32
  }
}

</mosaic_0001>

<llo_original>
// kernel: tpu_custom_call.1
$region0: #{tpu_custom_call.1}
  #allocation0 [shape = 'u32[]', space=smem, size = 0x4, offset = 0x4, fixed_abs, tag = 'smem constant byte address 0x4 - core index']
  #allocation1 [shape = 'u32[144,128]{1,0:T(1,128)}', space=vmem, size = 0x12000, scoped, tag = 'internal scratch']
  %s0 = inlined_call_operand.hbm [shape: f32[4,8,64], index: 0, kind: input, shape index: {}]
  %s1 = inlined_call_operand.hbm [shape: f32[8,64], index: 1, kind: output, shape index: {}]
  %s2 = sld [smem:[#allocation0]]
  $region18: #{tpu_custom_call.1} parent=0
    _
  %s4 = ssub.s32 1, %s2
  %s5 = scalar_select 0, %s4, %s2
  $region1: #{tpu_custom_call.1} parent=0
    #allocation2 [shape = 'u8[16384]{0}', space=vmem, size = 0x4000, scoped, tag = 'input window, operand 0, single buffered']
    #allocation3 [shape = 's32[1]{0}', space=sflag, size = 0x4, scoped, tag = 'scoped memory for tpu_custom_call.1']
    #allocation4 [shape = 's32[1]{0}', space=sflag, size = 0x4, scoped, tag = 'scoped memory for tpu_custom_call.1']
    #allocation5 [shape = 'u8[4096]{0}', space=vmem, size = 0x1000, scoped, tag = 'output window, operand 0, single buffered']
    %6 = vsyncpa [#allocation3], 0
    %7 = vsyncpa [#allocation4], 0
    // Predicated region
    $region2: #{tpu_custom_call.1} parent=1 // pred_check
      _
    $region3: #{tpu_custom_call.1} parent=1 // pred_check_branch
      %9 = sbr.rel (0) target = $region5
    $region4: #{tpu_custom_call.1} parent=1 // pred_region
      %s11 = ssub.s32 512, 512
      %12 = vsyncadd [#allocation3], %s11
      %s13 = sshll.u32 [#allocation2], 4
      %s14 = int_to_ptr.vmem [resolvable:$true] %s13
      %19 = dma.hbm_to_vmem [thread:$0]  %s0, 512, %s14, [#allocation3], 128, 128, 8
    $region5: #{tpu_custom_call.1} parent=1 // pred_fallthru
      _
    // Predicated region
    $region6: #{tpu_custom_call.1} parent=1 // pred_check
      _
    $region7: #{tpu_custom_call.1} parent=1 // pred_check_branch
      %21 = sbr.rel (0) target = $region9
    $region8: #{tpu_custom_call.1} parent=1 // pred_region
      %22 = dma.done [#allocation3], 512
    $region9: #{tpu_custom_call.1} parent=1 // pred_fallthru
      _
    %v23 = vld [vmem:[#allocation2] sm:$0xff]
    %s24 = scalar_lea.vmem [#allocation2], 8
    %v25 = vld [vmem:[%s24] sm:$0xff]
    %v26 = vmax.f32 %v23, %v25
    %s27 = scalar_lea.vmem [#allocation2], 16
    %v28 = vld [vmem:[%s27] sm:$0xff]
    %v29 = vmax.f32 %v26, %v28
    %s30 = scalar_lea.vmem [#allocation2], 24
    %v31 = vld [vmem:[%s30] sm:$0xff]
    %v32 = vmax.f32 %v29, %v31
    %vm33 = vcmask 523264
    %34 = vst.msk [vmem:[#allocation5] sm:$0xff] %vm33, %v32
    // Predicated region
    $region10: #{tpu_custom_call.1} parent=1 // pred_check
      _
    $region11: #{tpu_custom_call.1} parent=1 // pred_check_branch
      %36 = sbr.rel (0) target = $region13
    $region12: #{tpu_custom_call.1} parent=1 // pred_region
      %s38 = ssub.s32 128, 128
      %39 = vsyncadd [#allocation4], %s38
      %s41 = sshll.u32 [#allocation5], 4
      %s42 = int_to_ptr.vmem [resolvable:$true] %s41
      %44 = dma.vmem_to_hbm [thread:$0]  %s42, 128, %s1, [#allocation4]
    $region13: #{tpu_custom_call.1} parent=1 // pred_fallthru
      _
    // Predicated region
    $region14: #{tpu_custom_call.1} parent=1 // pred_check
      _
    $region15: #{tpu_custom_call.1} parent=1 // pred_check_branch
      %46 = sbr.rel (0) target = $region17
    $region16: #{tpu_custom_call.1} parent=1 // pred_region
      %47 = dma.done [#allocation4], 128
    $region17: #{tpu_custom_call.1} parent=1 // pred_fallthru
      _
    %48 = vsyncpa [#allocation3], 1
    %49 = vsyncpa [#allocation4], 1

</llo_original>
